<compile_context>
chip_gen: v7x
topology: tpu7x:2x2x1
jax: 0.10.0
libtpu: 0.0.40
codegen_flags: <defaults>
</compile_context>

<pallas_src>
import math

import jax
import jax.numpy as jnp
from jax.experimental import pallas as pl
from jax.experimental.pallas import tpu as pltpu


def _round_up(x, m):
    return (x + m - 1) // m * m


def _cdiv(a, b):
    return (a + b - 1) // b


def _vmem_limit_bytes():
    """Generation-aware scoped-VMEM budget: ~half of physical VMEM, capped at
    64 MiB (v5e/v6e have 128 MiB, v7x only 64 MiB).  Safe fallback: 32 MiB."""
    phys = 64 * 1024 * 1024
    try:
        phys = int(getattr(pltpu.get_tpu_info(), "vmem_capacity_bytes", phys))
    except Exception:
        pass
    return max(32 * 1024 * 1024, min(phys // 2, 64 * 1024 * 1024))


def _choose_batch_tile(N, block_n):
    """Batch tile size.  Small batches: one full-extent tile (no row padding,
    full-dim blocks are exempt from the 8-row rule).  Batches >= 512: split so
    the 'parallel' grid axis has >= 2 steps (keeps both v7x TensorCores busy)
    while each tile stays >= 256 rows (per-step overhead vs HBM roofline)."""
    if N < 512:
        return N
    if N <= block_n:
        return _round_up(_cdiv(N, 2), 8)
    return block_n


def factorized_readout_kernel(x_ref, wf_ref, wl_ref, b_ref, o_ref, acc_ref):
    """Grid = (batch tiles [parallel], K tiles [arbitrary, reduction]).

      acc(tn,Fp) += bf16(x_tile) @ Wfac_tile          f32 accumulation (MXU)
      out(tn,Op)  = acc @ Wl_pad + bias               on the last K step only
    """
    k = pl.program_id(1)

    @pl.when(k == 0)
    def _():
        acc_ref[...] = jnp.zeros_like(acc_ref)

    # In-kernel f32 -> bf16 cast: VPU work hidden under the DMA bottleneck,
    # avoids a separate cast+pad pass over x in HBM.
    acc_ref[...] += jnp.dot(
        x_ref[...].astype(jnp.bfloat16),
        wf_ref[...],
        preferred_element_type=jnp.float32)

    @pl.when(k == pl.num_programs(1) - 1)
    def _():
        # Tiny (tn, F_pad) x (F_pad, O_pad) dot kept in f32 for accuracy.
        o_ref[...] = (jnp.dot(acc_ref[...], wl_ref[...],
                              preferred_element_type=jnp.float32)
                      + b_ref[...])


def factorized_conv2d(x, gamma, beta, wp4, wd4, wl, b, *, eps=1e-5,
                      block_n=512, block_k=2048):
    """Forward pass of FactorizedConv2D.

    x: [N, C, H, W]; gamma/beta: [C]; wp4: [F, C, 1, 1]; wd4: [F, 1, H, W];
    wl: [O, F]; b: [O].  Returns [N, O] float32.
    """
    N, C, H, W = x.shape
    S = H * W
    K = C * S
    Fct = wp4.shape[0]
    O = wl.shape[0]
    assert wp4.shape == (Fct, C, 1, 1)
    assert wd4.shape == (Fct, 1, H, W), (
        "Linear(in_features=factors) requires the depthwise kernel to cover "
        "the full spatial extent of the point-conv output")
    assert b.shape == (O,)

    x = x.astype(jnp.float32)

    # ---- BatchNorm2d batch statistics (training mode, biased variance). ----
    # Two-pass centered variance: numerically robust (matches PyTorch) vs the
    # cancelling E[x^2]-E[x]^2 form.  Only 2*C scalars leave these reductions.
    mean = jnp.mean(x, axis=(0, 2, 3))                                    # (C,)
    var = jnp.mean(jnp.square(x - mean[None, :, None, None]),
                   axis=(0, 2, 3))                                        # (C,)
    a = gamma.astype(jnp.float32) * jax.lax.rsqrt(var + eps)              # (C,)
    d = beta.astype(jnp.float32) - mean * a                               # (C,)

    # ---- Low-rank fold: point conv + depthwise conv + BN scale -> (K, F) ---
    wp = wp4.reshape(Fct, C).astype(jnp.float32)                          # (F, C)
    wd = wd4.reshape(Fct, S).astype(jnp.float32)                          # (F, S)
    wlf = wl.astype(jnp.float32)                                          # (O, F)
    w_fac = jnp.einsum('c,fc,fs->csf', a, wp, wd).reshape(K, Fct)         # (K, F)
    # BN shift folded into the bias via per-factor sums (no large temps).
    b_eff = b.astype(jnp.float32) + wlf @ ((wp @ d) * jnp.sum(wd, axis=1))  # (O,)

    # ---- Padding / tiling ---------------------------------------------------
    f_pad = _round_up(Fct, 128)               # lane-dense intermediate
    o_pad = _round_up(O, 128)                 # unmasked (lane-dense) stores
    tn = _choose_batch_tile(N, block_n)       # batch tile (parallel axis)
    n_pad = _round_up(N, tn)
    tk = K if K <= block_k else block_k       # K tile (reduction axis)
    k_pad = _round_up(K, tk)

    wf_pad = jnp.zeros((k_pad, f_pad), jnp.bfloat16).at[:K, :Fct].set(
        w_fac.astype(jnp.bfloat16))
    wl_pad = jnp.zeros((f_pad, o_pad), jnp.float32).at[:Fct, :O].set(wlf.T)
    b_pad = jnp.zeros((1, o_pad), jnp.float32).at[0, :O].set(b_eff)

    x_mat = x.reshape(N, K)                   # contiguous NCHW flatten (f32)
    if n_pad != N or k_pad != K:              # only copies when tiles don't divide
        x_mat = jnp.pad(x_mat, ((0, n_pad - N), (0, k_pad - K)))

    grid = (n_pad // tn, k_pad // tk)
    cost = pl.CostEstimate(
        flops=2 * n_pad * k_pad * f_pad + 2 * n_pad * f_pad * o_pad,
        transcendentals=0,
        bytes_accessed=(n_pad * k_pad * 4                       # x (f32, once)
                        + (n_pad // tn) * k_pad * f_pad * 2     # Wfac per batch tile
                        + f_pad * o_pad * 4 + o_pad * 4         # Wl + bias
                        + n_pad * o_pad * 4),                   # output
    )

    out_pad = pl.pallas_call(
        factorized_readout_kernel,
        out_shape=jax.ShapeDtypeStruct((n_pad, o_pad), jnp.float32),
        grid=grid,
        in_specs=[
            pl.BlockSpec((tn, tk), lambda i, k: (i, k)),        # x tile (f32, streamed)
            pl.BlockSpec((tk, f_pad), lambda i, k: (k, 0)),     # Wfac tile (bf16, streamed over K)
            pl.BlockSpec((f_pad, o_pad), lambda i, k: (0, 0)),  # Wl (tiny, resident)
            pl.BlockSpec((1, o_pad), lambda i, k: (0, 0)),      # effective bias
        ],
        out_specs=pl.BlockSpec((tn, o_pad), lambda i, k: (i, 0)),  # resident across K
        scratch_shapes=[pltpu.VMEM((tn, f_pad), jnp.float32)],     # f32 accumulator
        compiler_params=pltpu.CompilerParams(
            # Batch tiles are independent -> shard across the 2 TCs on v7x;
            # K is the reduction axis (last, "arbitrary").
            dimension_semantics=("parallel", "arbitrary"),
            vmem_limit_bytes=_vmem_limit_bytes(),
        ),
        cost_estimate=cost,
    )(x_mat, wf_pad, wl_pad, b_pad)

    if n_pad == N and o_pad == O:
        return out_pad                        # avoid the post-kernel slice copy
    return out_pad[:N, :O]


def reference(x, gamma, beta, wp4, wd4, wl, b, eps=1e-5):
    """Plain-JAX (f32, highest precision) mirror of the PyTorch forward."""
    Fct = wp4.shape[0]
    hi = jax.lax.Precision.HIGHEST
    mean = x.mean(axis=(0, 2, 3), keepdims=True)
    var = ((x - mean) ** 2).mean(axis=(0, 2, 3), keepdims=True)  # biased
    xbn = (x - mean) / jnp.sqrt(var + eps)
    xbn = xbn * gamma.reshape(1, -1, 1, 1) + beta.reshape(1, -1, 1, 1)
    y = jax.lax.conv_general_dilated(
        xbn, wp4, (1, 1), 'VALID',
        dimension_numbers=('NCHW', 'OIHW', 'NCHW'), precision=hi)
    z = jax.lax.conv_general_dilated(
        y, wd4, (1, 1), 'VALID',
        dimension_numbers=('NCHW', 'OIHW', 'NCHW'),
        feature_group_count=Fct, precision=hi)
    z = z.reshape(z.shape[0], -1)                                  # (N, F)
    return jnp.dot(z, wl.T, precision=hi) + b[None, :]


if __name__ == "__main__":
    # Small shapes consistent with the module: kernel_size == spatial dims so
    # that flatten(start_dim=1) yields exactly `factors` features.
    N, C, H, W = 2, 4, 16, 16
    Fct, O = 8, 10

    key = jax.random.PRNGKey(0)
    k1, k2, k3, k4, kg, kb, kx = jax.random.split(key, 7)

    gain_relu = math.sqrt(2.0)
    # point_conv.weight: (F, C, 1, 1), xavier_uniform w/ relu gain
    bound_p = gain_relu * math.sqrt(6.0 / (C * 1 + Fct * 1))
    wp4 = jax.random.uniform(k1, (Fct, C, 1, 1), jnp.float32, -bound_p, bound_p)
    # depth_conv.weight: (F, 1, H, W), xavier_uniform w/ relu gain
    rfs = H * W
    bound_d = gain_relu * math.sqrt(6.0 / (1 * rfs + Fct * rfs))
    wd4 = jax.random.uniform(k2, (Fct, 1, H, W), jnp.float32, -bound_d, bound_d)
    # linear.weight: (O, F), xavier_uniform w/ linear gain; bias default init
    bound_l = math.sqrt(6.0 / (Fct + O))
    wl = jax.random.uniform(k3, (O, Fct), jnp.float32, -bound_l, bound_l)
    bound_b = 1.0 / math.sqrt(Fct)
    b = jax.random.uniform(k4, (O,), jnp.float32, -bound_b, bound_b)
    # BatchNorm affine params (learnable; perturbed to exercise the BN fold)
    gamma = 1.0 + 0.1 * jax.random.normal(kg, (C,), jnp.float32)
    beta = 0.1 * jax.random.normal(kb, (C,), jnp.float32)

    x = jax.random.normal(kx, (N, C, H, W), jnp.float32)

    out = jax.jit(factorized_conv2d)(x, gamma, beta, wp4, wd4, wl, b)
    out = jax.block_until_ready(out)

    ref = reference(x, gamma, beta, wp4, wd4, wl, b)
    assert out.shape == (N, O)
    # bf16 MXU operands on the K contraction with f32 accumulation.
    assert jnp.allclose(out, ref, atol=2e-2, rtol=2e-2), (
        f"max abs err {jnp.max(jnp.abs(out - ref))}")

    print("KERNEL_OK")
</pallas_src>

<mosaic_0001>
module attributes {stable_mosaic.version = 11 : i64} {
  func.func @factorized_readout_kernel(%arg0: i32, %arg1: i32, %arg2: memref<2x1024xf32, #tpu.memory_space<vmem>>, %arg3: memref<1024x128xbf16, #tpu.memory_space<vmem>>, %arg4: memref<128x128xf32, #tpu.memory_space<vmem>>, %arg5: memref<1x128xf32, #tpu.memory_space<vmem>>, %arg6: memref<2x128xf32, #tpu.memory_space<vmem>>, %arg7: memref<2x128xf32, #tpu.memory_space<vmem>>) attributes {dimension_semantics = [#tpu.dimension_semantics<parallel>, #tpu.dimension_semantics<arbitrary>], iteration_bounds = array<i64: 1, 1>, scalar_prefetch = 0 : i64, scratch_operands = 1 : i64, tpu.core_type = #tpu.core_type<tc>, window_params = [{transform_indices = @transform_0, window_bounds = array<i64: 2, 1024>}, {transform_indices = @transform_1, window_bounds = array<i64: 1024, 128>}, {pipeline_mode = #tpu.pipeline_mode<synchronous>, transform_indices = @transform_2, window_bounds = array<i64: 128, 128>}, {pipeline_mode = #tpu.pipeline_mode<synchronous>, transform_indices = @transform_3, window_bounds = array<i64: 1, 128>}, {transform_indices = @transform_4, window_bounds = array<i64: 2, 128>}]} {
    %c0_i32 = arith.constant 0 : i32
    %0 = arith.cmpi eq, %arg1, %c0_i32 : i32
    %1 = arith.extui %0 : i1 to i32
    %c0_i32_0 = arith.constant 0 : i32
    %2 = arith.cmpi ne, %1, %c0_i32_0 : i32
    scf.if %2 {
      %cst_10 = arith.constant 0.000000e+00 : f32
      %13 = vector.broadcast %cst_10 : f32 to vector<2x128xf32>
      %c0_11 = arith.constant 0 : index
      %c0_12 = arith.constant 0 : index
      %14 = vector.load %arg7[%c0_11, %c0_12] : memref<2x128xf32, #tpu.memory_space<vmem>>, vector<2x128xf32>
      tpu.vector_store %arg7[%c0_11, %c0_12], %13 {strides = array<i32>} : memref<2x128xf32, #tpu.memory_space<vmem>>, vector<2x128xf32>,
    } else {
    }
    %c0 = arith.constant 0 : index
    %c0_1 = arith.constant 0 : index
    %3 = vector.load %arg7[%c0, %c0_1] : memref<2x128xf32, #tpu.memory_space<vmem>>, vector<2x128xf32>
    %c0_2 = arith.constant 0 : index
    %c0_3 = arith.constant 0 : index
    %4 = vector.load %arg2[%c0_2, %c0_3] : memref<2x1024xf32, #tpu.memory_space<vmem>>, vector<2x1024xf32>
    %5 = arith.truncf %4 : vector<2x1024xf32> to vector<2x1024xbf16>
    %c0_4 = arith.constant 0 : index
    %c0_5 = arith.constant 0 : index
    %6 = vector.load %arg3[%c0_4, %c0_5] : memref<1024x128xbf16, #tpu.memory_space<vmem>>, vector<1024x128xbf16>
    %cst = arith.constant dense<0.000000e+00> : vector<2x128xf32>
    %7 = tpu.matmul %5, %6, %cst {dimension_numbers = #tpu.dot_dimension_numbers<[1], [0], [0], [1], [0, 0, 1, 1], [], []>} : vector<2x1024xbf16>, vector<1024x128xbf16>, vector<2x128xf32> -> vector<2x128xf32>
    %8 = arith.addf %3, %7 : vector<2x128xf32>
    %c0_6 = arith.constant 0 : index
    %c0_7 = arith.constant 0 : index
    %9 = vector.load %arg7[%c0_6, %c0_7] : memref<2x128xf32, #tpu.memory_space<vmem>>, vector<2x128xf32>
    tpu.vector_store %arg7[%c0_6, %c0_7], %8 {strides = array<i32>} : memref<2x128xf32, #tpu.memory_space<vmem>>, vector<2x128xf32>,
    %c0_i32_8 = arith.constant 0 : i32
    %10 = arith.cmpi eq, %arg1, %c0_i32_8 : i32
    %11 = arith.extui %10 : i1 to i32
    %c0_i32_9 = arith.constant 0 : i32
    %12 = arith.cmpi ne, %11, %c0_i32_9 : i32
    scf.if %12 {
      %c0_10 = arith.constant 0 : index
      %c0_11 = arith.constant 0 : index
      %13 = vector.load %arg7[%c0_10, %c0_11] : memref<2x128xf32, #tpu.memory_space<vmem>>, vector<2x128xf32>
      %c0_12 = arith.constant 0 : index
      %c0_13 = arith.constant 0 : index
      %14 = vector.load %arg4[%c0_12, %c0_13] : memref<128x128xf32, #tpu.memory_space<vmem>>, vector<128x128xf32>
      %cst_14 = arith.constant dense<0.000000e+00> : vector<2x128xf32>
      %15 = tpu.matmul %13, %14, %cst_14 {dimension_numbers = #tpu.dot_dimension_numbers<[1], [0], [0], [1], [0, 0, 1, 1], [], []>} : vector<2x128xf32>, vector<128x128xf32>, vector<2x128xf32> -> vector<2x128xf32>
      %c0_15 = arith.constant 0 : index
      %c0_16 = arith.constant 0 : index
      %16 = vector.load %arg5[%c0_15, %c0_16] : memref<1x128xf32, #tpu.memory_space<vmem>>, vector<1x128xf32>
      %17 = vector.broadcast %16 : vector<1x128xf32> to vector<2x128xf32>
      %18 = arith.addf %15, %17 : vector<2x128xf32>
      %c0_17 = arith.constant 0 : index
      %c0_18 = arith.constant 0 : index
      %19 = vector.load %arg6[%c0_17, %c0_18] : memref<2x128xf32, #tpu.memory_space<vmem>>, vector<2x128xf32>
      tpu.vector_store %arg6[%c0_17, %c0_18], %18 {strides = array<i32>} : memref<2x128xf32, #tpu.memory_space<vmem>>, vector<2x128xf32>,
    } else {
    }
    return
  }
  func.func @transform_0(%arg0: i32, %arg1: i32) -> (i32, i32) {
    %c0_i32 = arith.constant 0 : i32
    return %arg0, %arg1 : i32, i32
  }
  func.func @transform_1(%arg0: i32, %arg1: i32) -> (i32, i32) {
    %c0_i32 = arith.constant 0 : i32
    %c0_i32_0 = arith.constant 0 : i32
    return %arg1, %c0_i32 : i32, i32
  }
  func.func @transform_2(%arg0: i32, %arg1: i32) -> (i32, i32) {
    %c0_i32 = arith.constant 0 : i32
    %c0_i32_0 = arith.constant 0 : i32
    %c0_i32_1 = arith.constant 0 : i32
    return %c0_i32, %c0_i32_0 : i32, i32
  }
  func.func @transform_3(%arg0: i32, %arg1: i32) -> (i32, i32) {
    %c0_i32 = arith.constant 0 : i32
    %c0_i32_0 = arith.constant 0 : i32
    %c0_i32_1 = arith.constant 0 : i32
    return %c0_i32, %c0_i32_0 : i32, i32
  }
  func.func @transform_4(%arg0: i32, %arg1: i32) -> (i32, i32) {
    %c0_i32 = arith.constant 0 : i32
    %c0_i32_0 = arith.constant 0 : i32
    return %arg0, %c0_i32 : i32, i32
  }
}

</mosaic_0001>

<llo_original>
// kernel: mul.5
$region0: #{mul.5}
  #allocation0 [shape = 's32[1]{0}', space=sflag, size = 0x4, scoped, tag = 'scoped memory for mul.5']
  %s0 = inlined_call_operand.vmem [shape: f32[8], index: 0, kind: input, shape index: {}]
  %s1 = inlined_call_operand.vmem [shape: f32[8], index: 1, kind: input, shape index: {}]
  %s2 = inlined_call_operand.vmem [shape: f32[8], index: 2, kind: output, shape index: {}]
  %v3 = vld [vmem:[%s0] sm:$0x1]
  %v4 = vld [vmem:[%s1] sm:$0x1]
  %5 = xla_tuple %v3, %v4
  %6 = xla_tuple %5
  %v7 = vmul.f32 %v3, %v4
  %8 = xla_tuple %v7
  %9 = vst [vmem:[%s2] sm:$0x1] %v7

// kernel: factorized_conv2d.1
$region0: #{factorized_conv2d.1}
  #allocation0 [shape = 'u32[]', space=smem, size = 0x4, offset = 0x4, fixed_abs, tag = 'smem constant byte address 0x4 - core index']
  #allocation1 [shape = 'u32[144,128]{1,0:T(1,128)}', space=vmem, size = 0x12000, scoped, tag = 'internal scratch']
  #allocation2 [shape = 'f32[2,128]{1,0:T(2,128)}', space=vmem, size = 0x400, scoped, tag = 'scratch operand']
  %s0 = inlined_call_operand.vmem [shape: f32[2,1024], index: 0, kind: input, shape index: {}]
  %s1 = inlined_call_operand.vmem [shape: bf16[1024,128], index: 1, kind: input, shape index: {}]
  %s2 = inlined_call_operand.vmem [shape: f32[128,128], index: 2, kind: input, shape index: {}]
  %s3 = inlined_call_operand.vmem [shape: f32[1,128], index: 3, kind: input, shape index: {}]
  %s4 = inlined_call_operand.hbm [shape: f32[2,128], index: 4, kind: output, shape index: {}]
  %s5 = sld [smem:[#allocation0]]
  $region34: #{factorized_conv2d.1} parent=0
    _
  %s7 = ssub.s32 1, %s5
  %s8 = scalar_select 0, %s7, %s5
  $region1: #{factorized_conv2d.1} parent=0
    #allocation3 [shape = 'u8[1024]{0}', space=vmem, size = 0x400, scoped, tag = 'output window, operand 0, single buffered']
    #allocation4 [shape = 's32[1]{0}', space=sflag, size = 0x4, scoped, tag = 'scoped memory for factorized_conv2d.1']
    %9 = vsyncpa [#allocation4], 0
    // Predicated region
    $region2: #{factorized_conv2d.1} parent=1 // pred_check
      _
    $region3: #{factorized_conv2d.1} parent=1 // pred_check_branch
      %11 = sbr.rel (0) target = $region5
    $region4: #{factorized_conv2d.1} parent=1 // pred_region
      _
    $region5: #{factorized_conv2d.1} parent=1 // pred_fallthru
      _
    // Predicated region
    $region6: #{factorized_conv2d.1} parent=1 // pred_check
      _
    $region7: #{factorized_conv2d.1} parent=1 // pred_check_branch
      %13 = sbr.rel (0) target = $region9
    $region8: #{factorized_conv2d.1} parent=1 // pred_region
      _
    $region9: #{factorized_conv2d.1} parent=1 // pred_fallthru
      _
    // Predicated region
    $region10: #{factorized_conv2d.1} parent=1 // pred_check
      _
    $region11: #{factorized_conv2d.1} parent=1 // pred_check_branch
      %15 = sbr.rel (0) target = $region13
    $region12: #{factorized_conv2d.1} parent=1 // pred_region
      _
    $region13: #{factorized_conv2d.1} parent=1 // pred_fallthru
      _
    // Predicated region
    $region14: #{factorized_conv2d.1} parent=1 // pred_check
      _
    $region15: #{factorized_conv2d.1} parent=1 // pred_check_branch
      %17 = sbr.rel (0) target = $region17
    $region16: #{factorized_conv2d.1} parent=1 // pred_region
      _
    $region17: #{factorized_conv2d.1} parent=1 // pred_fallthru
      _
    %p19 = scmp.eq.s32.totalorder 0, 0
    // Predicated region
    $region18: #{factorized_conv2d.1} parent=1 // pred_check
      %p20 = pneg %p19
    $region19: #{factorized_conv2d.1} parent=1 // pred_check_branch
      %22 = sbr.rel (%p20) target = $region21
    $region20: #{factorized_conv2d.1} parent=1 // pred_region
      %23 = vst [vmem:[#allocation2] sm:$0x3] 0.0
    $region21: #{factorized_conv2d.1} parent=1 // pred_fallthru
      _
    %v24 = vld [vmem:[#allocation2] sm:$0x3]
    %v25 = vld [vmem:[%s0] sm:$0xff]
    %v26 = vld [vmem:[%s0 + $0x8] sm:$0xff]
    %v29 = vcombine.high %v25, %v25
    %v31 = vunpack.c.l.s4 1983009808
    %v32 = vunpack.c.0.s8 %v31
    %v33 = vlaneseq
    %v34 = vshrl.u32 %v33, 7
    %v35 = vsub.s32 %v32, %v34
    %v36 = vrot.slane %v25, %v35
    %v38 = vunpack.c.l.s4 1983009808
    %v39 = vunpack.c.0.s8 %v38
    %v40 = vlaneseq
    %v41 = vshrl.u32 %v40, 7
    %v42 = vsub.s32 %v39, %v41
    %v43 = vrot.slane %v29, %v42
    %v44 = vcombine.high %v36, %v36
    %v45 = vcombine.high %v43, %v43
    %v46 = vcombine.high %v26, %v26
    %v48 = vunpack.c.l.s4 1983009808
    %v49 = vunpack.c.0.s8 %v48
    %v50 = vlaneseq
    %v51 = vshrl.u32 %v50, 7
    %v52 = vsub.s32 %v49, %v51
    %v53 = vrot.slane %v26, %v52
    %v55 = vunpack.c.l.s4 1983009808
    %v56 = vunpack.c.0.s8 %v55
    %v57 = vlaneseq
    %v58 = vshrl.u32 %v57, 7
    %v59 = vsub.s32 %v56, %v58
    %v60 = vrot.slane %v46, %v59
    %v61 = vcombine.high %v53, %v53
    %v62 = vcombine.high %v60, %v60
    %v71 = vpack.c.bf16 %v36, %v36
    %v72 = vpack.c.bf16 %v44, %v44
    %v73 = vpack.c.bf16 %v43, %v43
    %v74 = vpack.c.bf16 %v45, %v45
    %v75 = vpack.c.bf16 %v53, %v53
    %v76 = vpack.c.bf16 %v61, %v61
    %v77 = vpack.c.bf16 %v60, %v60
    %v78 = vpack.c.bf16 %v62, %v62
    %v79 = vld [vmem:[%s1] sm:$0xf]
    %v80 = vld [vmem:[%s1 + $0x4] sm:$0xf]
    %v81 = vld [vmem:[%s1 + $0x8] sm:$0xf]
    %v82 = vld [vmem:[%s1 + $0xc] sm:$0xf]
    %v83 = vld [vmem:[%s1 + $0x10] sm:$0xf]
    %v84 = vld [vmem:[%s1 + $0x14] sm:$0xf]
    %v85 = vld [vmem:[%s1 + $0x18] sm:$0xf]
    %v86 = vld [vmem:[%s1 + $0x1c] sm:$0xf]
    %v87 = vld [vmem:[%s1 + $0x20] sm:$0xf]
    %v88 = vld [vmem:[%s1 + $0x24] sm:$0xf]
    %v89 = vld [vmem:[%s1 + $0x28] sm:$0xf]
    %v90 = vld [vmem:[%s1 + $0x2c] sm:$0xf]
    %v91 = vld [vmem:[%s1 + $0x30] sm:$0xf]
    %v92 = vld [vmem:[%s1 + $0x34] sm:$0xf]
    %v93 = vld [vmem:[%s1 + $0x38] sm:$0xf]
    %v94 = vld [vmem:[%s1 + $0x3c] sm:$0xf]
    %v95 = vld [vmem:[%s1 + $0x40] sm:$0xf]
    %v96 = vld [vmem:[%s1 + $0x44] sm:$0xf]
    %v97 = vld [vmem:[%s1 + $0x48] sm:$0xf]
    %v98 = vld [vmem:[%s1 + $0x4c] sm:$0xf]
    %v99 = vld [vmem:[%s1 + $0x50] sm:$0xf]
    %v100 = vld [vmem:[%s1 + $0x54] sm:$0xf]
    %v101 = vld [vmem:[%s1 + $0x58] sm:$0xf]
    %v102 = vld [vmem:[%s1 + $0x5c] sm:$0xf]
    %v103 = vld [vmem:[%s1 + $0x60] sm:$0xf]
    %v104 = vld [vmem:[%s1 + $0x64] sm:$0xf]
    %v105 = vld [vmem:[%s1 + $0x68] sm:$0xf]
    %v106 = vld [vmem:[%s1 + $0x6c] sm:$0xf]
    %v107 = vld [vmem:[%s1 + $0x70] sm:$0xf]
    %v108 = vld [vmem:[%s1 + $0x74] sm:$0xf]
    %v109 = vld [vmem:[%s1 + $0x78] sm:$0xf]
    %v110 = vld [vmem:[%s1 + $0x7c] sm:$0xf]
    %v111 = vld [vmem:[%s1 + $0x80] sm:$0xf]
    %v112 = vld [vmem:[%s1 + $0x84] sm:$0xf]
    %v113 = vld [vmem:[%s1 + $0x88] sm:$0xf]
    %v114 = vld [vmem:[%s1 + $0x8c] sm:$0xf]
    %v115 = vld [vmem:[%s1 + $0x90] sm:$0xf]
    %v116 = vld [vmem:[%s1 + $0x94] sm:$0xf]
    %v117 = vld [vmem:[%s1 + $0x98] sm:$0xf]
    %v118 = vld [vmem:[%s1 + $0x9c] sm:$0xf]
    %v119 = vld [vmem:[%s1 + $0xa0] sm:$0xf]
    %v120 = vld [vmem:[%s1 + $0xa4] sm:$0xf]
    %v121 = vld [vmem:[%s1 + $0xa8] sm:$0xf]
    %v122 = vld [vmem:[%s1 + $0xac] sm:$0xf]
    %v123 = vld [vmem:[%s1 + $0xb0] sm:$0xf]
    %v124 = vld [vmem:[%s1 + $0xb4] sm:$0xf]
    %v125 = vld [vmem:[%s1 + $0xb8] sm:$0xf]
    %v126 = vld [vmem:[%s1 + $0xbc] sm:$0xf]
    %v127 = vld [vmem:[%s1 + $0xc0] sm:$0xf]
    %v128 = vld [vmem:[%s1 + $0xc4] sm:$0xf]
    %v129 = vld [vmem:[%s1 + $0xc8] sm:$0xf]
    %v130 = vld [vmem:[%s1 + $0xcc] sm:$0xf]
    %v131 = vld [vmem:[%s1 + $0xd0] sm:$0xf]
    %v132 = vld [vmem:[%s1 + $0xd4] sm:$0xf]
    %v133 = vld [vmem:[%s1 + $0xd8] sm:$0xf]
    %v134 = vld [vmem:[%s1 + $0xdc] sm:$0xf]
    %v135 = vld [vmem:[%s1 + $0xe0] sm:$0xf]
    %v136 = vld [vmem:[%s1 + $0xe4] sm:$0xf]
    %v137 = vld [vmem:[%s1 + $0xe8] sm:$0xf]
    %v138 = vld [vmem:[%s1 + $0xec] sm:$0xf]
    %v139 = vld [vmem:[%s1 + $0xf0] sm:$0xf]
    %v140 = vld [vmem:[%s1 + $0xf4] sm:$0xf]
    %v141 = vld [vmem:[%s1 + $0xf8] sm:$0xf]
    %v142 = vld [vmem:[%s1 + $0xfc] sm:$0xf]
    %v143 = vld [vmem:[%s1 + $0x100] sm:$0xf]
    %v144 = vld [vmem:[%s1 + $0x104] sm:$0xf]
    %v145 = vld [vmem:[%s1 + $0x108] sm:$0xf]
    %v146 = vld [vmem:[%s1 + $0x10c] sm:$0xf]
    %v147 = vld [vmem:[%s1 + $0x110] sm:$0xf]
    %v148 = vld [vmem:[%s1 + $0x114] sm:$0xf]
    %v149 = vld [vmem:[%s1 + $0x118] sm:$0xf]
    %v150 = vld [vmem:[%s1 + $0x11c] sm:$0xf]
    %v151 = vld [vmem:[%s1 + $0x120] sm:$0xf]
    %v152 = vld [vmem:[%s1 + $0x124] sm:$0xf]
    %v153 = vld [vmem:[%s1 + $0x128] sm:$0xf]
    %v154 = vld [vmem:[%s1 + $0x12c] sm:$0xf]
    %v155 = vld [vmem:[%s1 + $0x130] sm:$0xf]
    %v156 = vld [vmem:[%s1 + $0x134] sm:$0xf]
    %v157 = vld [vmem:[%s1 + $0x138] sm:$0xf]
    %v158 = vld [vmem:[%s1 + $0x13c] sm:$0xf]
    %v159 = vld [vmem:[%s1 + $0x140] sm:$0xf]
    %v160 = vld [vmem:[%s1 + $0x144] sm:$0xf]
    %v161 = vld [vmem:[%s1 + $0x148] sm:$0xf]
    %v162 = vld [vmem:[%s1 + $0x14c] sm:$0xf]
    %v163 = vld [vmem:[%s1 + $0x150] sm:$0xf]
    %v164 = vld [vmem:[%s1 + $0x154] sm:$0xf]
    %v165 = vld [vmem:[%s1 + $0x158] sm:$0xf]
    %v166 = vld [vmem:[%s1 + $0x15c] sm:$0xf]
    %v167 = vld [vmem:[%s1 + $0x160] sm:$0xf]
    %v168 = vld [vmem:[%s1 + $0x164] sm:$0xf]
    %v169 = vld [vmem:[%s1 + $0x168] sm:$0xf]
    %v170 = vld [vmem:[%s1 + $0x16c] sm:$0xf]
    %v171 = vld [vmem:[%s1 + $0x170] sm:$0xf]
    %v172 = vld [vmem:[%s1 + $0x174] sm:$0xf]
    %v173 = vld [vmem:[%s1 + $0x178] sm:$0xf]
    %v174 = vld [vmem:[%s1 + $0x17c] sm:$0xf]
    %v175 = vld [vmem:[%s1 + $0x180] sm:$0xf]
    %v176 = vld [vmem:[%s1 + $0x184] sm:$0xf]
    %v177 = vld [vmem:[%s1 + $0x188] sm:$0xf]
    %v178 = vld [vmem:[%s1 + $0x18c] sm:$0xf]
    %v179 = vld [vmem:[%s1 + $0x190] sm:$0xf]
    %v180 = vld [vmem:[%s1 + $0x194] sm:$0xf]
    %v181 = vld [vmem:[%s1 + $0x198] sm:$0xf]
    %v182 = vld [vmem:[%s1 + $0x19c] sm:$0xf]
    %v183 = vld [vmem:[%s1 + $0x1a0] sm:$0xf]
    %v184 = vld [vmem:[%s1 + $0x1a4] sm:$0xf]
    %v185 = vld [vmem:[%s1 + $0x1a8] sm:$0xf]
    %v186 = vld [vmem:[%s1 + $0x1ac] sm:$0xf]
    %v187 = vld [vmem:[%s1 + $0x1b0] sm:$0xf]
    %v188 = vld [vmem:[%s1 + $0x1b4] sm:$0xf]
    %v189 = vld [vmem:[%s1 + $0x1b8] sm:$0xf]
    %v190 = vld [vmem:[%s1 + $0x1bc] sm:$0xf]
    %v191 = vld [vmem:[%s1 + $0x1c0] sm:$0xf]
    %v192 = vld [vmem:[%s1 + $0x1c4] sm:$0xf]
    %v193 = vld [vmem:[%s1 + $0x1c8] sm:$0xf]
    %v194 = vld [vmem:[%s1 + $0x1cc] sm:$0xf]
    %v195 = vld [vmem:[%s1 + $0x1d0] sm:$0xf]
    %v196 = vld [vmem:[%s1 + $0x1d4] sm:$0xf]
    %v197 = vld [vmem:[%s1 + $0x1d8] sm:$0xf]
    %v198 = vld [vmem:[%s1 + $0x1dc] sm:$0xf]
    %v199 = vld [vmem:[%s1 + $0x1e0] sm:$0xf]
    %v200 = vld [vmem:[%s1 + $0x1e4] sm:$0xf]
    %v201 = vld [vmem:[%s1 + $0x1e8] sm:$0xf]
    %v202 = vld [vmem:[%s1 + $0x1ec] sm:$0xf]
    %v203 = vld [vmem:[%s1 + $0x1f0] sm:$0xf]
    %v204 = vld [vmem:[%s1 + $0x1f4] sm:$0xf]
    %v205 = vld [vmem:[%s1 + $0x1f8] sm:$0xf]
    %v206 = vld [vmem:[%s1 + $0x1fc] sm:$0xf]
    %v335 = vunpack.c.l.b16 %v79
    %v336 = vunpack.c.l.b16 %v80
    %v337 = vunpack.c.l.b16 %v81
    %v338 = vunpack.c.l.b16 %v82
    %v339 = vunpack.c.l.b16 %v83
    %v340 = vunpack.c.l.b16 %v84
    %v341 = vunpack.c.l.b16 %v85
    %v342 = vunpack.c.l.b16 %v86
    %v343 = vunpack.c.l.b16 %v87
    %v344 = vunpack.c.l.b16 %v88
    %v345 = vunpack.c.l.b16 %v89
    %v346 = vunpack.c.l.b16 %v90
    %v347 = vunpack.c.l.b16 %v91
    %v348 = vunpack.c.l.b16 %v92
    %v349 = vunpack.c.l.b16 %v93
    %v350 = vunpack.c.l.b16 %v94
    %v351 = vunpack.c.l.b16 %v95
    %v352 = vunpack.c.l.b16 %v96
    %v353 = vunpack.c.l.b16 %v97
    %v354 = vunpack.c.l.b16 %v98
    %v355 = vunpack.c.l.b16 %v99
    %v356 = vunpack.c.l.b16 %v100
    %v357 = vunpack.c.l.b16 %v101
    %v358 = vunpack.c.l.b16 %v102
    %v359 = vunpack.c.l.b16 %v103
    %v360 = vunpack.c.l.b16 %v104
    %v361 = vunpack.c.l.b16 %v105
    %v362 = vunpack.c.l.b16 %v106
    %v363 = vunpack.c.l.b16 %v107
    %v364 = vunpack.c.l.b16 %v108
    %v365 = vunpack.c.l.b16 %v109
    %v366 = vunpack.c.l.b16 %v110
    %v367 = vunpack.c.l.b16 %v111
    %v368 = vunpack.c.l.b16 %v112
    %v369 = vunpack.c.l.b16 %v113
    %v370 = vunpack.c.l.b16 %v114
    %v371 = vunpack.c.l.b16 %v115
    %v372 = vunpack.c.l.b16 %v116
    %v373 = vunpack.c.l.b16 %v117
    %v374 = vunpack.c.l.b16 %v118
    %v375 = vunpack.c.l.b16 %v119
    %v376 = vunpack.c.l.b16 %v120
    %v377 = vunpack.c.l.b16 %v121
    %v378 = vunpack.c.l.b16 %v122
    %v379 = vunpack.c.l.b16 %v123
    %v380 = vunpack.c.l.b16 %v124
    %v381 = vunpack.c.l.b16 %v125
    %v382 = vunpack.c.l.b16 %v126
    %v383 = vunpack.c.l.b16 %v127
    %v384 = vunpack.c.l.b16 %v128
    %v385 = vunpack.c.l.b16 %v129
    %v386 = vunpack.c.l.b16 %v130
    %v387 = vunpack.c.l.b16 %v131
    %v388 = vunpack.c.l.b16 %v132
    %v389 = vunpack.c.l.b16 %v133
    %v390 = vunpack.c.l.b16 %v134
    %v391 = vunpack.c.l.b16 %v135
    %v392 = vunpack.c.l.b16 %v136
    %v393 = vunpack.c.l.b16 %v137
    %v394 = vunpack.c.l.b16 %v138
    %v395 = vunpack.c.l.b16 %v139
    %v396 = vunpack.c.l.b16 %v140
    %v397 = vunpack.c.l.b16 %v141
    %v398 = vunpack.c.l.b16 %v142
    %v399 = vunpack.c.l.b16 %v143
    %v400 = vunpack.c.l.b16 %v144
    %v401 = vunpack.c.l.b16 %v145
    %v402 = vunpack.c.l.b16 %v146
    %v403 = vunpack.c.l.b16 %v147
    %v404 = vunpack.c.l.b16 %v148
    %v405 = vunpack.c.l.b16 %v149
    %v406 = vunpack.c.l.b16 %v150
    %v407 = vunpack.c.l.b16 %v151
    %v408 = vunpack.c.l.b16 %v152
    %v409 = vunpack.c.l.b16 %v153
    %v410 = vunpack.c.l.b16 %v154
    %v411 = vunpack.c.l.b16 %v155
    %v412 = vunpack.c.l.b16 %v156
    %v413 = vunpack.c.l.b16 %v157
    %v414 = vunpack.c.l.b16 %v158
    %v415 = vunpack.c.l.b16 %v159
    %v416 = vunpack.c.l.b16 %v160
    %v417 = vunpack.c.l.b16 %v161
    %v418 = vunpack.c.l.b16 %v162
    %v419 = vunpack.c.l.b16 %v163
    %v420 = vunpack.c.l.b16 %v164
    %v421 = vunpack.c.l.b16 %v165
    %v422 = vunpack.c.l.b16 %v166
    %v423 = vunpack.c.l.b16 %v167
    %v424 = vunpack.c.l.b16 %v168
    %v425 = vunpack.c.l.b16 %v169
    %v426 = vunpack.c.l.b16 %v170
    %v427 = vunpack.c.l.b16 %v171
    %v428 = vunpack.c.l.b16 %v172
    %v429 = vunpack.c.l.b16 %v173
    %v430 = vunpack.c.l.b16 %v174
    %v431 = vunpack.c.l.b16 %v175
    %v432 = vunpack.c.l.b16 %v176
    %v433 = vunpack.c.l.b16 %v177
    %v434 = vunpack.c.l.b16 %v178
    %v435 = vunpack.c.l.b16 %v179
    %v436 = vunpack.c.l.b16 %v180
    %v437 = vunpack.c.l.b16 %v181
    %v438 = vunpack.c.l.b16 %v182
    %v439 = vunpack.c.l.b16 %v183
    %v440 = vunpack.c.l.b16 %v184
    %v441 = vunpack.c.l.b16 %v185
    %v442 = vunpack.c.l.b16 %v186
    %v443 = vunpack.c.l.b16 %v187
    %v444 = vunpack.c.l.b16 %v188
    %v445 = vunpack.c.l.b16 %v189
    %v446 = vunpack.c.l.b16 %v190
    %v447 = vunpack.c.l.b16 %v191
    %v448 = vunpack.c.l.b16 %v192
    %v449 = vunpack.c.l.b16 %v193
    %v450 = vunpack.c.l.b16 %v194
    %v451 = vunpack.c.l.b16 %v195
    %v452 = vunpack.c.l.b16 %v196
    %v453 = vunpack.c.l.b16 %v197
    %v454 = vunpack.c.l.b16 %v198
    %v455 = vunpack.c.l.b16 %v199
    %v456 = vunpack.c.l.b16 %v200
    %v457 = vunpack.c.l.b16 %v201
    %v458 = vunpack.c.l.b16 %v202
    %v459 = vunpack.c.l.b16 %v203
    %v460 = vunpack.c.l.b16 %v204
    %v461 = vunpack.c.l.b16 %v205
    %v462 = vunpack.c.l.b16 %v206
    %v463 = vpack.c.b16 %v336, %v335
    %v464 = vpack.c.b16 %v338, %v337
    %v465 = vpack.c.b16 %v340, %v339
    %v466 = vpack.c.b16 %v342, %v341
    %v467 = vpack.c.b16 %v344, %v343
    %v468 = vpack.c.b16 %v346, %v345
    %v469 = vpack.c.b16 %v348, %v347
    %v470 = vpack.c.b16 %v350, %v349
    %v471 = vpack.c.b16 %v352, %v351
    %v472 = vpack.c.b16 %v354, %v353
    %v473 = vpack.c.b16 %v356, %v355
    %v474 = vpack.c.b16 %v358, %v357
    %v475 = vpack.c.b16 %v360, %v359
    %v476 = vpack.c.b16 %v362, %v361
    %v477 = vpack.c.b16 %v364, %v363
    %v478 = vpack.c.b16 %v366, %v365
    %v479 = vpack.c.b16 %v368, %v367
    %v480 = vpack.c.b16 %v370, %v369
    %v481 = vpack.c.b16 %v372, %v371
    %v482 = vpack.c.b16 %v374, %v373
    %v483 = vpack.c.b16 %v376, %v375
    %v484 = vpack.c.b16 %v378, %v377
    %v485 = vpack.c.b16 %v380, %v379
    %v486 = vpack.c.b16 %v382, %v381
    %v487 = vpack.c.b16 %v384, %v383
    %v488 = vpack.c.b16 %v386, %v385
    %v489 = vpack.c.b16 %v388, %v387
    %v490 = vpack.c.b16 %v390, %v389
    %v491 = vpack.c.b16 %v392, %v391
    %v492 = vpack.c.b16 %v394, %v393
    %v493 = vpack.c.b16 %v396, %v395
    %v494 = vpack.c.b16 %v398, %v397
    %v495 = vpack.c.b16 %v400, %v399
    %v496 = vpack.c.b16 %v402, %v401
    %v497 = vpack.c.b16 %v404, %v403
    %v498 = vpack.c.b16 %v406, %v405
    %v499 = vpack.c.b16 %v408, %v407
    %v500 = vpack.c.b16 %v410, %v409
    %v501 = vpack.c.b16 %v412, %v411
    %v502 = vpack.c.b16 %v414, %v413
    %v503 = vpack.c.b16 %v416, %v415
    %v504 = vpack.c.b16 %v418, %v417
    %v505 = vpack.c.b16 %v420, %v419
    %v506 = vpack.c.b16 %v422, %v421
    %v507 = vpack.c.b16 %v424, %v423
    %v508 = vpack.c.b16 %v426, %v425
    %v509 = vpack.c.b16 %v428, %v427
    %v510 = vpack.c.b16 %v430, %v429
    %v511 = vpack.c.b16 %v432, %v431
    %v512 = vpack.c.b16 %v434, %v433
    %v513 = vpack.c.b16 %v436, %v435
    %v514 = vpack.c.b16 %v438, %v437
    %v515 = vpack.c.b16 %v440, %v439
    %v516 = vpack.c.b16 %v442, %v441
    %v517 = vpack.c.b16 %v444, %v443
    %v518 = vpack.c.b16 %v446, %v445
    %v519 = vpack.c.b16 %v448, %v447
    %v520 = vpack.c.b16 %v450, %v449
    %v521 = vpack.c.b16 %v452, %v451
    %v522 = vpack.c.b16 %v454, %v453
    %v523 = vpack.c.b16 %v456, %v455
    %v524 = vpack.c.b16 %v458, %v457
    %v525 = vpack.c.b16 %v460, %v459
    %v526 = vpack.c.b16 %v462, %v461
    %591 = vmatprep.subr.bf16.mxu0 0
    %592 = vmatpush1.bf16.msra.mxu0 %v463
    %593 = vmatprep.subr.bf16.mxu0 0
    %594 = vmatpush1.bf16.msra.mxu0 %v464
    %595 = vmatprep.subr.bf16.mxu0 0
    %596 = vmatpush1.bf16.msra.mxu0 %v465
    %597 = vmatprep.subr.bf16.mxu0 0
    %598 = vmatpush1.bf16.msra.mxu0 %v466
    %599 = vmatprep.subr.bf16.mxu0 0
    %600 = vmatpush1.bf16.msra.mxu0 %v467
    %601 = vmatprep.subr.bf16.mxu0 0
    %602 = vmatpush1.bf16.msra.mxu0 %v468
    %603 = vmatprep.subr.bf16.mxu0 0
    %604 = vmatpush1.bf16.msra.mxu0 %v469
    %605 = vmatprep.subr.bf16.mxu0 0
    %606 = vmatpush1.bf16.msra.mxu0 %v470
    %607 = vmatprep.subr.bf16.mxu0 0
    %608 = vmatpush1.bf16.msra.mxu0 %v471
    %609 = vmatprep.subr.bf16.mxu0 0
    %610 = vmatpush1.bf16.msra.mxu0 %v472
    %611 = vmatprep.subr.bf16.mxu0 0
    %612 = vmatpush1.bf16.msra.mxu0 %v473
    %613 = vmatprep.subr.bf16.mxu0 0
    %614 = vmatpush1.bf16.msra.mxu0 %v474
    %615 = vmatprep.subr.bf16.mxu0 0
    %616 = vmatpush1.bf16.msra.mxu0 %v475
    %617 = vmatprep.subr.bf16.mxu0 0
    %618 = vmatpush1.bf16.msra.mxu0 %v476
    %619 = vmatprep.subr.bf16.mxu0 0
    %620 = vmatpush1.bf16.msra.mxu0 %v477
    %621 = vmatprep.subr.bf16.mxu0 0
    %622 = vmatpush1.bf16.msra.mxu0 %v478
    %623 = vmatprep.mubr.bf16.mxu0 %v72
    %624 = vmatmul.mubr.bf16.gmra.mrb[0].mxu0 %v71
    %v625 = vpop.f32.mrb[0].mxu0
    %v626 = vadd.f32 0.0, %v625
    %v627 = vpop.f32.mrb[0].mxu0
    %v628 = vpop.f32.mrb[0].mxu0
    %v629 = vpop.f32.mrb[0].mxu0
    %630 = vdwg.mxu0
    %631 = vmatprep.subr.bf16.mxu0 0
    %632 = vmatpush1.bf16.msra.mxu0 %v479
    %633 = vmatprep.subr.bf16.mxu0 0
    %634 = vmatpush1.bf16.msra.mxu0 %v480
    %635 = vmatprep.subr.bf16.mxu0 0
    %636 = vmatpush1.bf16.msra.mxu0 %v481
    %637 = vmatprep.subr.bf16.mxu0 0
    %638 = vmatpush1.bf16.msra.mxu0 %v482
    %639 = vmatprep.subr.bf16.mxu0 0
    %640 = vmatpush1.bf16.msra.mxu0 %v483
    %641 = vmatprep.subr.bf16.mxu0 0
    %642 = vmatpush1.bf16.msra.mxu0 %v484
    %643 = vmatprep.subr.bf16.mxu0 0
    %644 = vmatpush1.bf16.msra.mxu0 %v485
    %645 = vmatprep.subr.bf16.mxu0 0
    %646 = vmatpush1.bf16.msra.mxu0 %v486
    %647 = vmatprep.subr.bf16.mxu0 0
    %648 = vmatpush1.bf16.msra.mxu0 %v487
    %649 = vmatprep.subr.bf16.mxu0 0
    %650 = vmatpush1.bf16.msra.mxu0 %v488
    %651 = vmatprep.subr.bf16.mxu0 0
    %652 = vmatpush1.bf16.msra.mxu0 %v489
    %653 = vmatprep.subr.bf16.mxu0 0
    %654 = vmatpush1.bf16.msra.mxu0 %v490
    %655 = vmatprep.subr.bf16.mxu0 0
    %656 = vmatpush1.bf16.msra.mxu0 %v491
    %657 = vmatprep.subr.bf16.mxu0 0
    %658 = vmatpush1.bf16.msra.mxu0 %v492
    %659 = vmatprep.subr.bf16.mxu0 0
    %660 = vmatpush1.bf16.msra.mxu0 %v493
    %661 = vmatprep.subr.bf16.mxu0 0
    %662 = vmatpush1.bf16.msra.mxu0 %v494
    %663 = vmatprep.mubr.bf16.mxu0 %v74
    %664 = vmatmul.mubr.bf16.gmra.mrb[0].mxu0 %v73
    %v665 = vpop.f32.mrb[0].mxu0
    %v666 = vadd.f32 %v626, %v665
    %v667 = vpop.f32.mrb[0].mxu0
    %v668 = vpop.f32.mrb[0].mxu0
    %v669 = vpop.f32.mrb[0].mxu0
    %670 = vdwg.mxu0
    %671 = vmatprep.subr.bf16.mxu0 0
    %672 = vmatpush1.bf16.msra.mxu0 %v495
    %673 = vmatprep.subr.bf16.mxu0 0
    %674 = vmatpush1.bf16.msra.mxu0 %v496
    %675 = vmatprep.subr.bf16.mxu0 0
    %676 = vmatpush1.bf16.msra.mxu0 %v497
    %677 = vmatprep.subr.bf16.mxu0 0
    %678 = vmatpush1.bf16.msra.mxu0 %v498
    %679 = vmatprep.subr.bf16.mxu0 0
    %680 = vmatpush1.bf16.msra.mxu0 %v499
    %681 = vmatprep.subr.bf16.mxu0 0
    %682 = vmatpush1.bf16.msra.mxu0 %v500
    %683 = vmatprep.subr.bf16.mxu0 0
    %684 = vmatpush1.bf16.msra.mxu0 %v501
    %685 = vmatprep.subr.bf16.mxu0 0
    %686 = vmatpush1.bf16.msra.mxu0 %v502
    %687 = vmatprep.subr.bf16.mxu0 0
    %688 = vmatpush1.bf16.msra.mxu0 %v503
    %689 = vmatprep.subr.bf16.mxu0 0
    %690 = vmatpush1.bf16.msra.mxu0 %v504
    %691 = vmatprep.subr.bf16.mxu0 0
    %692 = vmatpush1.bf16.msra.mxu0 %v505
    %693 = vmatprep.subr.bf16.mxu0 0
    %694 = vmatpush1.bf16.msra.mxu0 %v506
    %695 = vmatprep.subr.bf16.mxu0 0
    %696 = vmatpush1.bf16.msra.mxu0 %v507
    %697 = vmatprep.subr.bf16.mxu0 0
    %698 = vmatpush1.bf16.msra.mxu0 %v508
    %699 = vmatprep.subr.bf16.mxu0 0
    %700 = vmatpush1.bf16.msra.mxu0 %v509
    %701 = vmatprep.subr.bf16.mxu0 0
    %702 = vmatpush1.bf16.msra.mxu0 %v510
    %703 = vmatprep.mubr.bf16.mxu0 %v76
    %704 = vmatmul.mubr.bf16.gmra.mrb[0].mxu0 %v75
    %v705 = vpop.f32.mrb[0].mxu0
    %v706 = vadd.f32 %v666, %v705
    %v707 = vpop.f32.mrb[0].mxu0
    %v708 = vpop.f32.mrb[0].mxu0
    %v709 = vpop.f32.mrb[0].mxu0
    %710 = vdwg.mxu0
    %711 = vmatprep.subr.bf16.mxu0 0
    %712 = vmatpush1.bf16.msra.mxu0 %v511
    %713 = vmatprep.subr.bf16.mxu0 0
    %714 = vmatpush1.bf16.msra.mxu0 %v512
    %715 = vmatprep.subr.bf16.mxu0 0
    %716 = vmatpush1.bf16.msra.mxu0 %v513
    %717 = vmatprep.subr.bf16.mxu0 0
    %718 = vmatpush1.bf16.msra.mxu0 %v514
    %719 = vmatprep.subr.bf16.mxu0 0
    %720 = vmatpush1.bf16.msra.mxu0 %v515
    %721 = vmatprep.subr.bf16.mxu0 0
    %722 = vmatpush1.bf16.msra.mxu0 %v516
    %723 = vmatprep.subr.bf16.mxu0 0
    %724 = vmatpush1.bf16.msra.mxu0 %v517
    %725 = vmatprep.subr.bf16.mxu0 0
    %726 = vmatpush1.bf16.msra.mxu0 %v518
    %727 = vmatprep.subr.bf16.mxu0 0
    %728 = vmatpush1.bf16.msra.mxu0 %v519
    %729 = vmatprep.subr.bf16.mxu0 0
    %730 = vmatpush1.bf16.msra.mxu0 %v520
    %731 = vmatprep.subr.bf16.mxu0 0
    %732 = vmatpush1.bf16.msra.mxu0 %v521
    %733 = vmatprep.subr.bf16.mxu0 0
    %734 = vmatpush1.bf16.msra.mxu0 %v522
    %735 = vmatprep.subr.bf16.mxu0 0
    %736 = vmatpush1.bf16.msra.mxu0 %v523
    %737 = vmatprep.subr.bf16.mxu0 0
    %738 = vmatpush1.bf16.msra.mxu0 %v524
    %739 = vmatprep.subr.bf16.mxu0 0
    %740 = vmatpush1.bf16.msra.mxu0 %v525
    %741 = vmatprep.subr.bf16.mxu0 0
    %742 = vmatpush1.bf16.msra.mxu0 %v526
    %743 = vmatprep.mubr.bf16.mxu0 %v78
    %744 = vmatmul.mubr.bf16.gmra.mrb[0].mxu0 %v77
    %v745 = vpop.f32.mrb[0].mxu0
    %v746 = vadd.f32 %v706, %v745
    %v747 = vpop.f32.mrb[0].mxu0
    %v748 = vpop.f32.mrb[0].mxu0
    %v749 = vpop.f32.mrb[0].mxu0
    %750 = vdwg.mxu0
    %v751 = vadd.f32 %v24, %v746
    %752 = vst [vmem:[#allocation2] sm:$0x3] %v751
    // Predicated region
    $region22: #{factorized_conv2d.1} parent=1 // pred_check
      %p753 = pneg %p19
    $region23: #{factorized_conv2d.1} parent=1 // pred_check_branch
      %755 = sbr.rel (%p753) target = $region25
    $region24: #{factorized_conv2d.1} parent=1 // pred_region
      %v756 = vld [vmem:[#allocation2] sm:$0x3]
      %v757 = vld [vmem:[%s2] sm:$0xff]
      %v758 = vld [vmem:[%s2 + $0x8] sm:$0xff]
      %v759 = vld [vmem:[%s2 + $0x10] sm:$0xff]
      %v760 = vld [vmem:[%s2 + $0x18] sm:$0xff]
      %v761 = vld [vmem:[%s2 + $0x20] sm:$0xff]
      %v762 = vld [vmem:[%s2 + $0x28] sm:$0xff]
      %v763 = vld [vmem:[%s2 + $0x30] sm:$0xff]
      %v764 = vld [vmem:[%s2 + $0x38] sm:$0xff]
      %v765 = vld [vmem:[%s2 + $0x40] sm:$0xff]
      %v766 = vld [vmem:[%s2 + $0x48] sm:$0xff]
      %v767 = vld [vmem:[%s2 + $0x50] sm:$0xff]
      %v768 = vld [vmem:[%s2 + $0x58] sm:$0xff]
      %v769 = vld [vmem:[%s2 + $0x60] sm:$0xff]
      %v770 = vld [vmem:[%s2 + $0x68] sm:$0xff]
      %v771 = vld [vmem:[%s2 + $0x70] sm:$0xff]
      %v772 = vld [vmem:[%s2 + $0x78] sm:$0xff]
      %v773 = vld [vmem:[%s3] sm:$0x1]
      %v775 = vlaneseq
      %v776 = vshrl.u32 %v775, 7
      %v777 = vsub.s32 0, %v776
      %v778 = vrot.slane %v773, %v777
      %780 = vmatprep.subr.mxu0 0.0
      %781 = vmatpush1.msra.mxu0 %v757
      %782 = vmatprep.subr.mxu0 0.0
      %783 = vmatpush1.msra.mxu0 %v758
      %784 = vmatprep.subr.mxu0 0.0
      %785 = vmatpush1.msra.mxu0 %v759
      %786 = vmatprep.subr.mxu0 0.0
      %787 = vmatpush1.msra.mxu0 %v760
      %788 = vmatprep.subr.mxu0 0.0
      %789 = vmatpush1.msra.mxu0 %v761
      %790 = vmatprep.subr.mxu0 0.0
      %791 = vmatpush1.msra.mxu0 %v762
      %792 = vmatprep.subr.mxu0 0.0
      %793 = vmatpush1.msra.mxu0 %v763
      %794 = vmatprep.subr.mxu0 0.0
      %795 = vmatpush1.msra.mxu0 %v764
      %796 = vmatprep.subr.mxu0 0.0
      %797 = vmatpush1.msra.mxu0 %v765
      %798 = vmatprep.subr.mxu0 0.0
      %799 = vmatpush1.msra.mxu0 %v766
      %800 = vmatprep.subr.mxu0 0.0
      %801 = vmatpush1.msra.mxu0 %v767
      %802 = vmatprep.subr.mxu0 0.0
      %803 = vmatpush1.msra.mxu0 %v768
      %804 = vmatprep.subr.mxu0 0.0
      %805 = vmatpush1.msra.mxu0 %v769
      %806 = vmatprep.subr.mxu0 0.0
      %807 = vmatpush1.msra.mxu0 %v770
      %808 = vmatprep.subr.mxu0 0.0
      %809 = vmatpush1.msra.mxu0 %v771
      %810 = vmatprep.subr.mxu0 0.0
      %811 = vmatpush1.msra.mxu0 %v772
      %812 = vmatprep.subr.mxu0 0.0
      %813 = vmatpush1.msra.mxu0 0.0
      %814 = vmatprep.subr.mxu0 0.0
      %815 = vmatpush1.msra.mxu0 0.0
      %816 = vmatprep.subr.mxu0 0.0
      %817 = vmatpush1.msra.mxu0 0.0
      %818 = vmatprep.subr.mxu0 0.0
      %819 = vmatpush1.msra.mxu0 0.0
      %820 = vmatprep.subr.mxu0 0.0
      %821 = vmatpush1.msra.mxu0 0.0
      %822 = vmatprep.subr.mxu0 0.0
      %823 = vmatpush1.msra.mxu0 0.0
      %824 = vmatprep.subr.mxu0 0.0
      %825 = vmatpush1.msra.mxu0 0.0
      %826 = vmatprep.subr.mxu0 0.0
      %827 = vmatpush1.msra.mxu0 0.0
      %828 = vmatprep.subr.mxu0 0.0
      %829 = vmatpush1.msra.mxu0 0.0
      %830 = vmatprep.subr.mxu0 0.0
      %831 = vmatpush1.msra.mxu0 0.0
      %832 = vmatprep.subr.mxu0 0.0
      %833 = vmatpush1.msra.mxu0 0.0
      %834 = vmatprep.subr.mxu0 0.0
      %835 = vmatpush1.msra.mxu0 0.0
      %836 = vmatprep.subr.mxu0 0.0
      %837 = vmatpush1.msra.mxu0 0.0
      %838 = vmatprep.subr.mxu0 0.0
      %839 = vmatpush1.msra.mxu0 0.0
      %840 = vmatprep.subr.mxu0 0.0
      %841 = vmatpush1.msra.mxu0 0.0
      %842 = vmatprep.subr.mxu0 0.0
      %843 = vmatpush1.msra.mxu0 0.0
      %844 = vmatprep.mubr.f32.mxu0 0.0
      %845 = vmatmul.mubr.f32.gmra.mrb[0].mxu0 %v756
      %v846 = vpop.f32.mrb[0].mxu0
      %v847 = vadd.f32 %v778, %v846
      %v848 = vpop.f32.mrb[0].mxu0
      %849 = vdwg.mxu0
      %850 = vst [vmem:[#allocation3] sm:$0x3] %v847
    $region25: #{factorized_conv2d.1} parent=1 // pred_fallthru
      _
    // Predicated region
    $region26: #{factorized_conv2d.1} parent=1 // pred_check
      _
    $region27: #{factorized_conv2d.1} parent=1 // pred_check_branch
      %852 = sbr.rel (0) target = $region29
    $region28: #{factorized_conv2d.1} parent=1 // pred_region
      %s854 = ssub.s32 32, 32
      %855 = vsyncadd [#allocation4], %s854
      %s857 = sshll.u32 [#allocation3], 4
      %s858 = int_to_ptr.vmem [resolvable:$true] %s857
      %860 = dma.vmem_to_hbm [thread:$0]  %s858, 32, %s4, [#allocation4]
    $region29: #{factorized_conv2d.1} parent=1 // pred_fallthru
      _
    // Predicated region
    $region30: #{factorized_conv2d.1} parent=1 // pred_check
      _
    $region31: #{factorized_conv2d.1} parent=1 // pred_check_branch
      %862 = sbr.rel (0) target = $region33
    $region32: #{factorized_conv2d.1} parent=1 // pred_region
      %863 = dma.done [#allocation4], 32
    $region33: #{factorized_conv2d.1} parent=1 // pred_fallthru
      _
    %864 = vsyncpa [#allocation4], 1

</llo_original>
